<compile_context>
chip_gen: v6e
topology: v6e:2x2x1
jax: 0.10.0
libtpu: 0.0.40
codegen_flags: <defaults>
</compile_context>

<pallas_src>
import jax
import jax.numpy as jnp
from jax import lax
from jax.experimental import pallas as pl
from jax.experimental.pallas import tpu as pltpu

LN_EPS = 1e-5


def _residual_ln_kernel(x_ref, xnd_ref, gamma_ref, beta_ref, o_ref):
    # All stats in f32 for numerical parity with PyTorch LayerNorm
    # (and because v5e's VPU has no bf16 ALU).
    s = x_ref[...].astype(jnp.float32) + xnd_ref[...].astype(jnp.float32)

    mean = jnp.mean(s, axis=-1, keepdims=True)
    # Recompute (s - mean) instead of keeping a `centered` tile live: only `s`
    # stays resident across the two reductions; the extra VALU subtract is free
    # filler under the DMA-bound regime.
    var = jnp.mean(jnp.square(s - mean), axis=-1, keepdims=True)
    inv = lax.rsqrt(var + LN_EPS)  # EUP slot -> essentially free

    gamma = gamma_ref[...].astype(jnp.float32)  # (1, d) broadcasts over rows
    beta = beta_ref[...].astype(jnp.float32)

    o_ref[...] = ((s - mean) * (inv * gamma) + beta).astype(o_ref.dtype)


def _round_up(x, m):
    return (x + m - 1) // m * m


def _tpu_info():
    """Returns (vmem_capacity_bytes, tensorcores_per_chip)."""
    kind = ""
    try:
        kind = (getattr(jax.devices()[0], "device_kind", "") or "").lower()
    except Exception:
        pass

    num_cores = 2 if "v7" in kind else 1

    cap = None
    try:
        info = pltpu.get_tpu_info()
        cap = int(getattr(info, "vmem_capacity_bytes", 0)) or None
    except Exception:
        cap = None
    if cap is None:
        # Device-kind fallback: v5e/v6e have 128 MiB/TC, v7x has 64 MiB/TC.
        if ("v5 lite" in kind or "v5e" in kind or "v5litepod" in kind
                or "v6" in kind):
            cap = 128 * 1024 * 1024
        else:
            cap = 64 * 1024 * 1024  # conservative (v7x)
    return cap, num_cores


def _per_row_vmem_bytes(d, dtype_bytes):
    # Double-buffered I/O: (2 inputs + 1 output) x 2 buffers
    # + live f32 intermediates in the body (`s` plus one transient temp).
    return 6 * d * dtype_bytes + 2 * d * 4


def _pick_block_rows(rows, d, dtype_bytes, vmem_capacity, num_cores):
    """Largest row tile that fits the VMEM budget; purely-streaming kernel wants
    the biggest clean tiles it can get (~85% of HBM roofline at >=512 rows)."""
    usable = int(vmem_capacity * 0.5)  # headroom for params / compiler scratch
    per_row = _per_row_vmem_bytes(d, dtype_bytes)
    br = usable // max(per_row, 1)
    br = min(br, 1024)  # diminishing returns beyond ~1k rows

    if br >= rows:
        # Single block; a full-extent block dim is always layout-legal.
        return rows

    # Keep a modest pipeline depth. 4 steps is plenty on a single TC (per-step
    # overhead ~0.35 us) and gives both v7x TCs balanced work.
    min_steps = 4
    br = min(br, max(pl.cdiv(rows, min_steps), 8))

    # Round DOWN to sublane alignment so the tile stays inside the budget we
    # just computed (covers f32 and bf16 sublane packing).
    br = max((br // 16) * 16, 8)

    # v7x: the single parallel grid axis is sharded across 2 TCs; prefer an
    # even number of steps so neither core idles at the tail.
    if num_cores >= 2 and br < rows:
        steps = pl.cdiv(rows, br)
        if steps % 2 == 1 and steps > 1:
            cand = _round_up(pl.cdiv(rows, steps + 1), 8)
            if cand >= 8 and pl.cdiv(rows, cand) % 2 == 0:
                br = min(br, cand)

    return int(max(br, 8))


def residual_forward(x, x_non_dropout, gamma, beta, *, block_rows=None):
    """x, x_non_dropout: [batch, seq, d_model]; gamma, beta: [d_model].

    Note: d_model should be a multiple of 128 for lane-dense (unmasked) stores;
    non-multiples still work but pay masked partial stores. Pad once at model
    setup if needed, not per call.
    """
    assert x.shape == x_non_dropout.shape
    b, s_len, d = x.shape
    rows = b * s_len
    dtype_bytes = jnp.dtype(x.dtype).itemsize

    vmem_capacity, num_cores = _tpu_info()
    if block_rows is None:
        block_rows = _pick_block_rows(rows, d, dtype_bytes, vmem_capacity,
                                      num_cores)
    block_rows = int(min(block_rows, rows))

    x2 = x.reshape(rows, d)
    xnd2 = x_non_dropout.reshape(rows, d)
    gamma2 = gamma.reshape(1, d)
    beta2 = beta.reshape(1, d)

    # No jnp.pad / output slice: a ragged last block is handled by Pallas
    # partial-block reads (padded, discarded) and masked writes — this avoids
    # ~3 extra full HBM passes on a memory-bound op.
    grid = (pl.cdiv(rows, block_rows),)

    # Scoped-VMEM limit derived from the corrected footprint (I/O double
    # buffers + f32 intermediates), clamped below physical capacity.
    footprint = block_rows * _per_row_vmem_bytes(d, dtype_bytes)
    vmem_limit = min(int(vmem_capacity * 0.9),
                     max(32 * 1024 * 1024, int(footprint * 1.25)))

    out = pl.pallas_call(
        _residual_ln_kernel,
        out_shape=jax.ShapeDtypeStruct((rows, d), x.dtype),
        grid=grid,
        in_specs=[
            pl.BlockSpec((block_rows, d), lambda i: (i, 0)),
            pl.BlockSpec((block_rows, d), lambda i: (i, 0)),
            pl.BlockSpec((1, d), lambda i: (0, 0)),  # gamma: resident
            pl.BlockSpec((1, d), lambda i: (0, 0)),  # beta: resident
        ],
        out_specs=pl.BlockSpec((block_rows, d), lambda i: (i, 0)),
        compiler_params=pltpu.CompilerParams(
            dimension_semantics=("parallel",),
            vmem_limit_bytes=int(vmem_limit),
        ),
    )(x2, xnd2, gamma2, beta2)

    return out.reshape(b, s_len, d)


def _reference(x, x_non_dropout, gamma, beta):
    s = x.astype(jnp.float32) + x_non_dropout.astype(jnp.float32)
    mean = jnp.mean(s, axis=-1, keepdims=True)
    var = jnp.mean((s - mean) ** 2, axis=-1, keepdims=True)
    return ((s - mean) * lax.rsqrt(var + LN_EPS) * gamma + beta).astype(x.dtype)


if __name__ == "__main__":
    key = jax.random.PRNGKey(0)
    kx, kxnd, kg, kb = jax.random.split(key, 4)

    # Small, lane-dense demo shape (d_model multiple of 128 -> unmasked stores).
    batch, seq, d_model = 2, 8, 128

    x = jax.random.normal(kx, (batch, seq, d_model), dtype=jnp.float32)
    x_non_dropout = jax.random.normal(kxnd, (batch, seq, d_model), dtype=jnp.float32)
    gamma = 1.0 + 0.1 * jax.random.normal(kg, (d_model,), dtype=jnp.float32)
    beta = 0.1 * jax.random.normal(kb, (d_model,), dtype=jnp.float32)

    out = jax.block_until_ready(residual_forward(x, x_non_dropout, gamma, beta))
    ref = _reference(x, x_non_dropout, gamma, beta)
    assert out.shape == (batch, seq, d_model)
    assert jnp.allclose(out, ref, atol=1e-5, rtol=1e-5), "mismatch vs reference"

    # Exercise the ragged-last-block path (rows not a multiple of the tile)
    # without any host-side padding.
    b2, s2 = 3, 5  # rows = 15, block_rows forced to 8 -> grid of 2, last block ragged
    x_b = jax.random.normal(kx, (b2, s2, d_model), dtype=jnp.float32)
    xnd_b = jax.random.normal(kxnd, (b2, s2, d_model), dtype=jnp.float32)
    out_b = jax.block_until_ready(
        residual_forward(x_b, xnd_b, gamma, beta, block_rows=8))
    ref_b = _reference(x_b, xnd_b, gamma, beta)
    assert jnp.allclose(out_b, ref_b, atol=1e-5, rtol=1e-5), "mismatch (ragged tail)"

    # bf16 I/O path (stats still f32 inside the kernel).
    x_h = x.astype(jnp.bfloat16)
    xnd_h = x_non_dropout.astype(jnp.bfloat16)
    out_h = jax.block_until_ready(residual_forward(x_h, xnd_h, gamma, beta))
    ref_h = _reference(x_h, xnd_h, gamma, beta)
    assert jnp.allclose(out_h.astype(jnp.float32), ref_h.astype(jnp.float32),
                        atol=2e-2, rtol=2e-2), "mismatch (bf16)"

    print("KERNEL_OK")
</pallas_src>

<mosaic_0001>
module attributes {stable_mosaic.version = 11 : i64} {
  func.func @_residual_ln_kernel(%arg0: i32, %arg1: memref<16x128xf32, #tpu.memory_space<vmem>>, %arg2: memref<16x128xf32, #tpu.memory_space<vmem>>, %arg3: memref<1x128xf32, #tpu.memory_space<vmem>>, %arg4: memref<1x128xf32, #tpu.memory_space<vmem>>, %arg5: memref<16x128xf32, #tpu.memory_space<vmem>>) attributes {dimension_semantics = [#tpu.dimension_semantics<parallel>], iteration_bounds = array<i64: 1>, scalar_prefetch = 0 : i64, scratch_operands = 0 : i64, tpu.core_type = #tpu.core_type<tc>, window_params = [{transform_indices = @transform_0, window_bounds = array<i64: 16, 128>}, {transform_indices = @transform_1, window_bounds = array<i64: 16, 128>}, {pipeline_mode = #tpu.pipeline_mode<synchronous>, transform_indices = @transform_2, window_bounds = array<i64: 1, 128>}, {pipeline_mode = #tpu.pipeline_mode<synchronous>, transform_indices = @transform_3, window_bounds = array<i64: 1, 128>}, {transform_indices = @transform_4, window_bounds = array<i64: 16, 128>}]} {
    %c0 = arith.constant 0 : index
    %c0_0 = arith.constant 0 : index
    %0 = vector.load %arg1[%c0, %c0_0] : memref<16x128xf32, #tpu.memory_space<vmem>>, vector<16x128xf32>
    %c0_1 = arith.constant 0 : index
    %c0_2 = arith.constant 0 : index
    %1 = vector.load %arg2[%c0_1, %c0_2] : memref<16x128xf32, #tpu.memory_space<vmem>>, vector<16x128xf32>
    %2 = arith.addf %0, %1 : vector<16x128xf32>
    %cst = arith.constant dense<0.000000e+00> : vector<16xf32>
    %3 = vector.multi_reduction <add>, %2, %cst [1] : vector<16x128xf32> to vector<16xf32>
    %4 = vector.shape_cast %3 : vector<16xf32> to vector<16x1xf32>
    %cst_3 = arith.constant 1.280000e+02 : f32
    %5 = vector.broadcast %cst_3 : f32 to vector<16x1xf32>
    %6 = arith.divf %4, %5 : vector<16x1xf32>
    %7 = vector.broadcast %6 : vector<16x1xf32> to vector<16x128xf32>
    %8 = arith.subf %2, %7 : vector<16x128xf32>
    %9 = arith.mulf %8, %8 : vector<16x128xf32>
    %cst_4 = arith.constant dense<0.000000e+00> : vector<16xf32>
    %10 = vector.multi_reduction <add>, %9, %cst_4 [1] : vector<16x128xf32> to vector<16xf32>
    %11 = vector.shape_cast %10 : vector<16xf32> to vector<16x1xf32>
    %cst_5 = arith.constant 1.280000e+02 : f32
    %12 = vector.broadcast %cst_5 : f32 to vector<16x1xf32>
    %13 = arith.divf %11, %12 : vector<16x1xf32>
    %cst_6 = arith.constant 9.99999974E-6 : f32
    %14 = vector.broadcast %cst_6 : f32 to vector<16x1xf32>
    %15 = arith.addf %13, %14 : vector<16x1xf32>
    %16 = math.rsqrt %15 : vector<16x1xf32>
    %c0_7 = arith.constant 0 : index
    %c0_8 = arith.constant 0 : index
    %17 = vector.load %arg3[%c0_7, %c0_8] : memref<1x128xf32, #tpu.memory_space<vmem>>, vector<1x128xf32>
    %c0_9 = arith.constant 0 : index
    %c0_10 = arith.constant 0 : index
    %18 = vector.load %arg4[%c0_9, %c0_10] : memref<1x128xf32, #tpu.memory_space<vmem>>, vector<1x128xf32>
    %19 = vector.broadcast %6 : vector<16x1xf32> to vector<16x128xf32>
    %20 = arith.subf %2, %19 : vector<16x128xf32>
    %21 = vector.broadcast %16 : vector<16x1xf32> to vector<16x128xf32>
    %22 = vector.broadcast %17 : vector<1x128xf32> to vector<16x128xf32>
    %23 = arith.mulf %21, %22 : vector<16x128xf32>
    %24 = arith.mulf %20, %23 : vector<16x128xf32>
    %25 = vector.broadcast %18 : vector<1x128xf32> to vector<16x128xf32>
    %26 = arith.addf %24, %25 : vector<16x128xf32>
    %c0_11 = arith.constant 0 : index
    %c0_12 = arith.constant 0 : index
    %27 = vector.load %arg5[%c0_11, %c0_12] : memref<16x128xf32, #tpu.memory_space<vmem>>, vector<16x128xf32>
    tpu.vector_store %arg5[%c0_11, %c0_12], %26 {strides = array<i32>} : memref<16x128xf32, #tpu.memory_space<vmem>>, vector<16x128xf32>,
    return
  }
  func.func @transform_0(%arg0: i32) -> (i32, i32) {
    %c0_i32 = arith.constant 0 : i32
    %c0_i32_0 = arith.constant 0 : i32
    return %arg0, %c0_i32 : i32, i32
  }
  func.func @transform_1(%arg0: i32) -> (i32, i32) {
    %c0_i32 = arith.constant 0 : i32
    %c0_i32_0 = arith.constant 0 : i32
    return %arg0, %c0_i32 : i32, i32
  }
  func.func @transform_2(%arg0: i32) -> (i32, i32) {
    %c0_i32 = arith.constant 0 : i32
    %c0_i32_0 = arith.constant 0 : i32
    %c0_i32_1 = arith.constant 0 : i32
    return %c0_i32, %c0_i32_0 : i32, i32
  }
  func.func @transform_3(%arg0: i32) -> (i32, i32) {
    %c0_i32 = arith.constant 0 : i32
    %c0_i32_0 = arith.constant 0 : i32
    %c0_i32_1 = arith.constant 0 : i32
    return %c0_i32, %c0_i32_0 : i32, i32
  }
  func.func @transform_4(%arg0: i32) -> (i32, i32) {
    %c0_i32 = arith.constant 0 : i32
    %c0_i32_0 = arith.constant 0 : i32
    return %arg0, %c0_i32 : i32, i32
  }
}

</mosaic_0001>

<llo_original>
// kernel: tpu_custom_call.1
$region0: #{tpu_custom_call.1}
  #allocation0 [shape = 'u32[]', space=smem, size = 0x4, offset = 0x4, fixed_abs, tag = 'smem constant byte address 0x4 - core index']
  #allocation1 [shape = 'u32[144,128]{1,0:T(1,128)}', space=vmem, size = 0x12000, scoped, tag = 'internal scratch']
  %s0 = inlined_call_operand.hbm [shape: f32[16,128], index: 0, kind: input, shape index: {}]
  %s1 = inlined_call_operand.hbm [shape: f32[16,128], index: 1, kind: input, shape index: {}]
  %s2 = inlined_call_operand.vmem [shape: f32[1,128], index: 2, kind: input, shape index: {}]
  %s3 = inlined_call_operand.vmem [shape: f32[1,128], index: 3, kind: input, shape index: {}]
  %s4 = inlined_call_operand.hbm [shape: f32[16,128], index: 4, kind: output, shape index: {}]
  %s5 = sld [smem:[#allocation0]]
  $region34: #{tpu_custom_call.1} parent=0
    _
  %s7 = ssub.s32 1, %s5
  %s8 = scalar_select 0, %s7, %s5
  $region1: #{tpu_custom_call.1} parent=0
    #allocation2 [shape = 'u8[8192]{0}', space=vmem, size = 0x2000, scoped, tag = 'input window, operand 0, single buffered']
    #allocation3 [shape = 's32[1]{0}', space=sflag, size = 0x4, scoped, tag = 'scoped memory for tpu_custom_call.1']
    #allocation4 [shape = 's32[1]{0}', space=sflag, size = 0x4, scoped, tag = 'scoped memory for tpu_custom_call.1']
    #allocation5 [shape = 'u8[8192]{0}', space=vmem, size = 0x2000, scoped, tag = 'input window, operand 1, single buffered']
    #allocation6 [shape = 's32[1]{0}', space=sflag, size = 0x4, scoped, tag = 'scoped memory for tpu_custom_call.1']
    #allocation7 [shape = 'u8[8192]{0}', space=vmem, size = 0x2000, scoped, tag = 'output window, operand 0, single buffered']
    %9 = vsyncpa [#allocation3], 0
    %10 = vsyncpa [#allocation6], 0
    %11 = vsyncpa [#allocation4], 0
    // Predicated region
    $region2: #{tpu_custom_call.1} parent=1 // pred_check
      _
    $region3: #{tpu_custom_call.1} parent=1 // pred_check_branch
      %13 = sbr.rel (0) target = $region5
    $region4: #{tpu_custom_call.1} parent=1 // pred_region
      %s15 = ssub.s32 256, 256
      %16 = vsyncadd [#allocation3], %s15
      %s17 = sshll.u32 [#allocation2], 4
      %s18 = int_to_ptr.vmem [resolvable:$true] %s17
      %23 = dma.hbm_to_vmem [thread:$0]  %s0, 256, %s18, [#allocation3], 128, 128, 8
    $region5: #{tpu_custom_call.1} parent=1 // pred_fallthru
      _
    // Predicated region
    $region6: #{tpu_custom_call.1} parent=1 // pred_check
      _
    $region7: #{tpu_custom_call.1} parent=1 // pred_check_branch
      %25 = sbr.rel (0) target = $region9
    $region8: #{tpu_custom_call.1} parent=1 // pred_region
      %s27 = ssub.s32 256, 256
      %28 = vsyncadd [#allocation6], %s27
      %s29 = sshll.u32 [#allocation5], 4
      %s30 = int_to_ptr.vmem [resolvable:$true] %s29
      %35 = dma.hbm_to_vmem [thread:$0]  %s1, 256, %s30, [#allocation6], 128, 128, 8
    $region9: #{tpu_custom_call.1} parent=1 // pred_fallthru
      _
    // Predicated region
    $region10: #{tpu_custom_call.1} parent=1 // pred_check
      _
    $region11: #{tpu_custom_call.1} parent=1 // pred_check_branch
      %37 = sbr.rel (0) target = $region13
    $region12: #{tpu_custom_call.1} parent=1 // pred_region
      _
    $region13: #{tpu_custom_call.1} parent=1 // pred_fallthru
      _
    // Predicated region
    $region14: #{tpu_custom_call.1} parent=1 // pred_check
      _
    $region15: #{tpu_custom_call.1} parent=1 // pred_check_branch
      %39 = sbr.rel (0) target = $region17
    $region16: #{tpu_custom_call.1} parent=1 // pred_region
      _
    $region17: #{tpu_custom_call.1} parent=1 // pred_fallthru
      _
    // Predicated region
    $region18: #{tpu_custom_call.1} parent=1 // pred_check
      _
    $region19: #{tpu_custom_call.1} parent=1 // pred_check_branch
      %41 = sbr.rel (0) target = $region21
    $region20: #{tpu_custom_call.1} parent=1 // pred_region
      %42 = dma.done [#allocation3], 256
    $region21: #{tpu_custom_call.1} parent=1 // pred_fallthru
      _
    // Predicated region
    $region22: #{tpu_custom_call.1} parent=1 // pred_check
      _
    $region23: #{tpu_custom_call.1} parent=1 // pred_check_branch
      %44 = sbr.rel (0) target = $region25
    $region24: #{tpu_custom_call.1} parent=1 // pred_region
      %45 = dma.done [#allocation6], 256
    $region25: #{tpu_custom_call.1} parent=1 // pred_fallthru
      _
    %v46 = vld [vmem:[#allocation2] sm:$0xff]
    %v47 = vld [vmem:[#allocation2 + $0x8] sm:$0xff]
    %v48 = vld [vmem:[#allocation5] sm:$0xff]
    %v49 = vld [vmem:[#allocation5 + $0x8] sm:$0xff]
    %v50 = vadd.f32 %v46, %v48
    %v51 = vadd.f32 %v47, %v49
    %52 = vadd.xlane.f32.xlu0 %v50
    %v53 = vpop.xlane.xlu0 %52
    %54 = vadd.xlane.f32.xlu0 %v51
    %v55 = vpop.xlane.xlu0 %54
    %v56 = vrcp.pop 128.0
    %v57 = vmul.f32 %v53, %v56
    %v58 = vmul.f32 %v55, %v56
    %v59 = vsub.f32 %v50, %v57
    %v60 = vsub.f32 %v51, %v58
    %v61 = vmul.f32 %v59, %v59
    %v62 = vmul.f32 %v60, %v60
    %63 = vadd.xlane.f32.xlu0 %v61
    %v64 = vpop.xlane.xlu0 %63
    %65 = vadd.xlane.f32.xlu0 %v62
    %v66 = vpop.xlane.xlu0 %65
    %v67 = vmul.f32 %v64, %v56
    %v68 = vmul.f32 %v66, %v56
    %v69 = vadd.f32 %v67, 1e-05
    %v70 = vadd.f32 %v68, 1e-05
    %v71 = vrsqrt.pop %v69
    %v72 = vrsqrt.pop %v70
    %v73 = vld [vmem:[%s2] sm:$0x1]
    %v74 = vld [vmem:[%s3] sm:$0x1]
    %v76 = vlaneseq
    %v77 = vshrl.u32 %v76, 7
    %v78 = vsub.s32 0, %v77
    %v79 = vrot.slane %v73, %v78
    %v81 = vmul.f32 %v71, %v79
    %v82 = vmul.f32 %v72, %v79
    %v83 = vmul.f32 %v59, %v81
    %v84 = vmul.f32 %v60, %v82
    %v86 = vlaneseq
    %v87 = vshrl.u32 %v86, 7
    %v88 = vsub.s32 0, %v87
    %v89 = vrot.slane %v74, %v88
    %v91 = vadd.f32 %v83, %v89
    %v92 = vadd.f32 %v84, %v89
    %93 = vst [vmem:[#allocation7] sm:$0xff] %v91
    %94 = vst [vmem:[#allocation7 + $0x8] sm:$0xff] %v92
    // Predicated region
    $region26: #{tpu_custom_call.1} parent=1 // pred_check
      _
    $region27: #{tpu_custom_call.1} parent=1 // pred_check_branch
      %96 = sbr.rel (0) target = $region29
    $region28: #{tpu_custom_call.1} parent=1 // pred_region
      %s98 = ssub.s32 256, 256
      %99 = vsyncadd [#allocation4], %s98
      %s100 = sshll.u32 [#allocation7], 4
      %s101 = int_to_ptr.vmem [resolvable:$true] %s100
      %106 = dma.vmem_to_hbm [thread:$0]  %s101, 256, %s4, [#allocation4], 128, 128, 8
    $region29: #{tpu_custom_call.1} parent=1 // pred_fallthru
      _
    // Predicated region
    $region30: #{tpu_custom_call.1} parent=1 // pred_check
      _
    $region31: #{tpu_custom_call.1} parent=1 // pred_check_branch
      %108 = sbr.rel (0) target = $region33
    $region32: #{tpu_custom_call.1} parent=1 // pred_region
      %109 = dma.done [#allocation4], 256
    $region33: #{tpu_custom_call.1} parent=1 // pred_fallthru
      _
    %110 = vsyncpa [#allocation3], 1
    %111 = vsyncpa [#allocation6], 1
    %112 = vsyncpa [#allocation4], 1

</llo_original>
